<compile_context>
chip_gen: v6e
topology: v6e:2x2x1
jax: 0.10.0
libtpu: 0.0.40
codegen_flags: <defaults>
</compile_context>

<pallas_src>
import functools

import jax
import jax.numpy as jnp
from jax.experimental import pallas as pl
from jax.experimental.pallas import tpu as pltpu


def attention_kernel(x_ref, bias_ref, w1_ref, b1_ref, w2_ref, b2_ref,
                     ctx_ref, wts_ref, *, use_bf16):
    # x_ref    : (BT, S, 2H)  tile of lstm_outputs (S padded to a multiple of 8)
    # bias_ref : (BT, S)      additive mask bias (0 valid / -1e9 padded)
    # w1_ref   : (2H, H), b1_ref: (1, H)
    # w2_ref   : (1, H)       second Linear's weight as a row vector
    # b2_ref   : (1, 1)
    # ctx_ref  : (BT, 2H)     context vectors
    # wts_ref  : (BT, S)      attention weights
    BT, S, D2 = x_ref.shape

    x = x_ref[...]                                   # (BT, S, 2H)
    # S is a multiple of 8, so merging (BT, S) never crosses an (8, 128) tile
    # boundary -> no relayout copy is materialized.
    x2d = x.reshape(BT * S, D2)

    # Linear(2H -> H) on the MXU (+ Tanh on the EUP).
    if use_bf16:
        # MXU-bound regime: bf16 inputs run at native MXU rate; f32 accumulate.
        h = jnp.dot(x2d.astype(jnp.bfloat16),
                    w1_ref[...].astype(jnp.bfloat16),
                    preferred_element_type=jnp.float32)
    else:
        h = jnp.dot(x2d, w1_ref[...], preferred_element_type=jnp.float32)
    h = jnp.tanh(h + b1_ref[...])                    # (BT*S, H)
    h3 = h.reshape(BT, S, -1)

    # Linear(H -> 1) as VPU mul + lane reduce (avoids an N=1 MXU matmul).
    s = jnp.sum(h3 * w2_ref[...], axis=-1) + b2_ref[...]   # (BT, S)

    # masked_fill(mask == 0, -1e9) as an additive bias.
    s = s + bias_ref[...]                            # (BT, S)

    # softmax over the sequence axis (lane-dense reductions).
    m = jnp.max(s, axis=-1, keepdims=True)           # (BT, 1)
    e = jnp.exp(s - m)                               # (BT, S)
    denom = jnp.sum(e, axis=-1, keepdims=True)       # (BT, 1)
    inv = pl.reciprocal(denom, approx=False)         # EUP slot; exact for wts
    w = e * inv                                      # (BT, S)

    # context = sum_t w_t * x_t (VPU mul + sublane reduce; not an M=1 matmul).
    ctx = jnp.sum(x * w[..., None], axis=1)          # (BT, 2H)

    wts_ref[...] = w
    ctx_ref[...] = ctx


def _scoped_vmem_limit_bytes():
    """Generation-aware scoped-VMEM limit (defaults are far below physical)."""
    phys = 64 * 1024 * 1024          # conservative default (v7x per-TensorCore)
    try:
        info = pltpu.get_tpu_info()
        for attr in ("vmem_capacity_bytes", "vmem_bytes", "vmem_size_bytes"):
            v = getattr(info, attr, None)
            if isinstance(v, int) and v > 0:
                phys = v
                break
    except Exception:
        pass
    # ~75% of physical, capped at 96 MiB  (v5e/v6e -> 96 MiB, v7x -> 48 MiB).
    return min(int(phys * 3 // 4), 96 * 1024 * 1024)


def _choose_batch_tile(B, S_pad, D2, H, vmem_limit_bytes):
    """Batch tile: multiple of 8, sized to fill the VMEM budget, and capped so
    the single (parallel) grid axis keeps >= 4 steps when the batch allows."""
    b8 = ((B + 7) // 8) * 8
    # Fixed footprint: double-buffered weights + slack for compiler scratch.
    fixed = 2 * (D2 * H * 4) + 2 * (2 * H * 4 + 4) + (2 << 20)
    # Per batch-row footprint: x tile (2x double-buffer + 1x broadcast temp),
    # the (S, H) tanh intermediate, bias/wts tiles (2x each), ctx (2x).
    per_row = (3 * S_pad * D2 * 4) + (S_pad * H * 4) + (4 * S_pad * 4) + (2 * D2 * 4)
    usable = max(vmem_limit_bytes - fixed, per_row * 8)
    bt_vmem = max(8, (usable // per_row) // 8 * 8)
    # Keep >= 4 grid steps (2 TensorCores x >= 2 pipelined steps) if possible.
    if b8 >= 32:
        bt_par = max(8, (b8 // 4) // 8 * 8)
    else:
        bt_par = b8
    return max(8, min(bt_vmem, bt_par, b8))


def attention_forward(lstm_outputs, mask, w1, b1, w2, b2):
    """Pallas equivalent of Attention.forward.

    lstm_outputs: (B, S, 2H) float32
    mask:         (B, S) (1 valid / 0 padded) or None
    returns (context_vector (B, 2H), attention_weights (B, S))
    """
    B, S, D2 = lstm_outputs.shape
    H = w1.shape[1]

    lstm_outputs = lstm_outputs.astype(jnp.float32)

    # additive mask bias, lane-dense (B, S)
    if mask is None:
        bias = jnp.zeros((B, S), dtype=jnp.float32)
    else:
        bias = jnp.where(mask == 0, jnp.float32(-1e9), jnp.float32(0.0))

    # Pad S to a multiple of 8 (sublane): padded columns get x=0, bias=-1e9,
    # so their softmax weight underflows to exactly 0 and they contribute
    # nothing to the context.
    S_pad = ((S + 7) // 8) * 8
    if S_pad != S:
        lstm_outputs = jnp.pad(lstm_outputs, ((0, 0), (0, S_pad - S), (0, 0)))
        bias = jnp.pad(bias, ((0, 0), (0, S_pad - S)),
                       constant_values=jnp.float32(-1e9))

    vmem_limit = _scoped_vmem_limit_bytes()
    bt = _choose_batch_tile(B, S_pad, D2, H, vmem_limit)
    B_pad = pl.cdiv(B, bt) * bt
    if B_pad != B:
        pad = B_pad - B
        lstm_outputs = jnp.pad(lstm_outputs, ((0, pad), (0, 0), (0, 0)))
        bias = jnp.pad(bias, ((0, pad), (0, 0)))     # padded rows: bias 0, x 0

    w1_2d = w1.reshape(D2, H).astype(jnp.float32)
    b1_2d = b1.reshape(1, H).astype(jnp.float32)
    w2_row = w2.reshape(1, H).astype(jnp.float32)    # (H, 1) -> row vector
    b2_2d = b2.reshape(1, 1).astype(jnp.float32)

    grid = (B_pad // bt,)
    kernel = functools.partial(attention_kernel, use_bf16=(H >= 256))

    # TODO(synk): on v7x, the weight inputs could use pipeline_mode=pl.Buffered(1)
    # (they never change across the grid) to halve their double-buffered footprint.
    ctx, wts = pl.pallas_call(
        kernel,
        grid=grid,
        in_specs=[
            pl.BlockSpec((bt, S_pad, D2), lambda b: (b, 0, 0)),   # lstm_outputs
            pl.BlockSpec((bt, S_pad), lambda b: (b, 0)),          # mask bias
            pl.BlockSpec((D2, H), lambda b: (0, 0)),              # W1
            pl.BlockSpec((1, H), lambda b: (0, 0)),               # b1
            pl.BlockSpec((1, H), lambda b: (0, 0)),               # W2 (row)
            pl.BlockSpec((1, 1), lambda b: (0, 0)),               # b2
        ],
        out_specs=[
            pl.BlockSpec((bt, D2), lambda b: (b, 0)),             # context
            pl.BlockSpec((bt, S_pad), lambda b: (b, 0)),          # attn weights
        ],
        out_shape=[
            jax.ShapeDtypeStruct((B_pad, D2), jnp.float32),
            jax.ShapeDtypeStruct((B_pad, S_pad), jnp.float32),
        ],
        compiler_params=pltpu.CompilerParams(
            dimension_semantics=("parallel",),
            vmem_limit_bytes=vmem_limit),
    )(lstm_outputs, bias, w1_2d, b1_2d, w2_row, b2_2d)

    return ctx[:B], wts[:B, :S]


def reference_forward(x, mask, w1, b1, w2, b2):
    # pure-JAX reference mirroring the PyTorch module
    scores = jnp.matmul(jnp.tanh(jnp.matmul(x, w1) + b1), w2) + b2   # (B, S, 1)
    scores = scores[..., 0]                                          # (B, S)
    if mask is not None:
        scores = jnp.where(mask == 0, jnp.float32(-1e9), scores)
    wts = jax.nn.softmax(scores, axis=1)
    ctx = jnp.sum(x * wts[..., None], axis=1)
    return ctx, wts


if __name__ == "__main__":
    # Small, deterministic shapes consistent with the module.
    B, S, H = 2, 8, 32
    D2 = 2 * H  # hidden_size * 2

    key = jax.random.PRNGKey(0)
    kx, k1, k2, k3, k4 = jax.random.split(key, 5)

    lstm_outputs = jax.random.normal(kx, (B, S, D2), dtype=jnp.float32)

    # deterministic parameter init (uniform +/- 1/sqrt(fan_in), like nn.Linear)
    bound1 = 1.0 / jnp.sqrt(jnp.float32(D2))
    w1 = jax.random.uniform(k1, (D2, H), jnp.float32, -bound1, bound1)
    b1 = jax.random.uniform(k2, (H,), jnp.float32, -bound1, bound1)
    bound2 = 1.0 / jnp.sqrt(jnp.float32(H))
    w2 = jax.random.uniform(k3, (H, 1), jnp.float32, -bound2, bound2)
    b2 = jax.random.uniform(k4, (1,), jnp.float32, -bound2, bound2)

    # mask: 1 for valid positions, 0 for padded (last two steps of batch 1 padded)
    mask = jnp.ones((B, S), dtype=jnp.int32)
    mask = mask.at[1, S - 2:].set(0)

    ctx, wts = attention_forward(lstm_outputs, mask, w1, b1, w2, b2)
    ctx = jax.block_until_ready(ctx)
    wts = jax.block_until_ready(wts)

    ctx_ref, wts_ref = reference_forward(lstm_outputs, mask, w1, b1, w2, b2)
    assert ctx.shape == (B, D2) and wts.shape == (B, S)
    assert jnp.allclose(ctx, ctx_ref, atol=1e-5, rtol=1e-5)
    assert jnp.allclose(wts, wts_ref, atol=1e-5, rtol=1e-5)

    # also exercise the mask=None path
    ctx2, wts2 = attention_forward(lstm_outputs, None, w1, b1, w2, b2)
    ctx2 = jax.block_until_ready(ctx2)
    ctx2_ref, wts2_ref = reference_forward(lstm_outputs, None, w1, b1, w2, b2)
    assert jnp.allclose(ctx2, ctx2_ref, atol=1e-5, rtol=1e-5)
    assert jnp.allclose(wts2, wts2_ref, atol=1e-5, rtol=1e-5)

    print("KERNEL_OK")
</pallas_src>

<mosaic_0001>
module attributes {stable_mosaic.version = 11 : i64} {
  func.func @attention_kernel(%arg0: i32, %arg1: memref<8x8x64xf32, #tpu.memory_space<vmem>>, %arg2: memref<8x8xf32, #tpu.memory_space<vmem>>, %arg3: memref<64x32xf32, #tpu.memory_space<vmem>>, %arg4: memref<1x32xf32, #tpu.memory_space<vmem>>, %arg5: memref<1x32xf32, #tpu.memory_space<vmem>>, %arg6: memref<1x1xf32, #tpu.memory_space<vmem>>, %arg7: memref<8x64xf32, #tpu.memory_space<vmem>>, %arg8: memref<8x8xf32, #tpu.memory_space<vmem>>) attributes {dimension_semantics = [#tpu.dimension_semantics<parallel>], iteration_bounds = array<i64: 1>, scalar_prefetch = 0 : i64, scratch_operands = 0 : i64, tpu.core_type = #tpu.core_type<tc>, window_params = [{transform_indices = @transform_0, window_bounds = array<i64: 8, 8, 64>}, {transform_indices = @transform_1, window_bounds = array<i64: 8, 8>}, {pipeline_mode = #tpu.pipeline_mode<synchronous>, transform_indices = @transform_2, window_bounds = array<i64: 64, 32>}, {pipeline_mode = #tpu.pipeline_mode<synchronous>, transform_indices = @transform_3, window_bounds = array<i64: 1, 32>}, {pipeline_mode = #tpu.pipeline_mode<synchronous>, transform_indices = @transform_4, window_bounds = array<i64: 1, 32>}, {pipeline_mode = #tpu.pipeline_mode<synchronous>, transform_indices = @transform_5, window_bounds = array<i64: 1, 1>}, {transform_indices = @transform_6, window_bounds = array<i64: 8, 64>}, {transform_indices = @transform_7, window_bounds = array<i64: 8, 8>}]} {
    %c0 = arith.constant 0 : index
    %c0_0 = arith.constant 0 : index
    %c0_1 = arith.constant 0 : index
    %0 = vector.load %arg1[%c0, %c0_0, %c0_1] : memref<8x8x64xf32, #tpu.memory_space<vmem>>, vector<8x8x64xf32>
    %1 = vector.shape_cast %0 : vector<8x8x64xf32> to vector<64x64xf32>
    %c0_2 = arith.constant 0 : index
    %c0_3 = arith.constant 0 : index
    %2 = vector.load %arg3[%c0_2, %c0_3] : memref<64x32xf32, #tpu.memory_space<vmem>>, vector<64x32xf32>
    %cst = arith.constant dense<0.000000e+00> : vector<64x32xf32>
    %3 = tpu.matmul %1, %2, %cst {dimension_numbers = #tpu.dot_dimension_numbers<[1], [0], [0], [1], [0, 0, 1, 1], [], []>} : vector<64x64xf32>, vector<64x32xf32>, vector<64x32xf32> -> vector<64x32xf32>
    %c0_4 = arith.constant 0 : index
    %c0_5 = arith.constant 0 : index
    %4 = vector.load %arg4[%c0_4, %c0_5] : memref<1x32xf32, #tpu.memory_space<vmem>>, vector<1x32xf32>
    %5 = vector.broadcast %4 : vector<1x32xf32> to vector<64x32xf32>
    %6 = arith.addf %3, %5 : vector<64x32xf32>
    %7 = math.tanh %6 : vector<64x32xf32>
    %8 = vector.shape_cast %7 : vector<64x32xf32> to vector<8x8x32xf32>
    %c0_6 = arith.constant 0 : index
    %c0_7 = arith.constant 0 : index
    %9 = vector.load %arg5[%c0_6, %c0_7] : memref<1x32xf32, #tpu.memory_space<vmem>>, vector<1x32xf32>
    %10 = vector.shape_cast %9 : vector<1x32xf32> to vector<1x1x32xf32>
    %11 = vector.broadcast %10 : vector<1x1x32xf32> to vector<8x8x32xf32>
    %12 = arith.mulf %8, %11 : vector<8x8x32xf32>
    %cst_8 = arith.constant dense<0.000000e+00> : vector<8x8xf32>
    %13 = vector.multi_reduction <add>, %12, %cst_8 [2] : vector<8x8x32xf32> to vector<8x8xf32>
    %c0_9 = arith.constant 0 : index
    %c0_10 = arith.constant 0 : index
    %14 = vector.load %arg6[%c0_9, %c0_10] : memref<1x1xf32, #tpu.memory_space<vmem>>, vector<1x1xf32>
    %15 = vector.broadcast %14 : vector<1x1xf32> to vector<8x8xf32>
    %16 = arith.addf %13, %15 : vector<8x8xf32>
    %c0_11 = arith.constant 0 : index
    %c0_12 = arith.constant 0 : index
    %17 = vector.load %arg2[%c0_11, %c0_12] : memref<8x8xf32, #tpu.memory_space<vmem>>, vector<8x8xf32>
    %18 = arith.addf %16, %17 : vector<8x8xf32>
    %cst_13 = arith.constant dense<0xFF800000> : vector<8xf32>
    %19 = vector.multi_reduction <maximumf>, %18, %cst_13 [1] : vector<8x8xf32> to vector<8xf32>
    %20 = vector.shape_cast %19 : vector<8xf32> to vector<8x1xf32>
    %21 = vector.broadcast %20 : vector<8x1xf32> to vector<8x8xf32>
    %22 = arith.subf %18, %21 : vector<8x8xf32>
    %23 = math.exp %22 : vector<8x8xf32>
    %cst_14 = arith.constant dense<0.000000e+00> : vector<8xf32>
    %24 = vector.multi_reduction <add>, %23, %cst_14 [1] : vector<8x8xf32> to vector<8xf32>
    %25 = vector.shape_cast %24 : vector<8xf32> to vector<8x1xf32>
    %26 = tpu.reciprocal %25 : vector<8x1xf32> -> vector<8x1xf32>
    %27 = vector.broadcast %26 : vector<8x1xf32> to vector<8x8xf32>
    %28 = arith.mulf %23, %27 : vector<8x8xf32>
    %29 = vector.shape_cast %28 : vector<8x8xf32> to vector<8x8x1xf32>
    %30 = vector.broadcast %29 : vector<8x8x1xf32> to vector<8x8x64xf32>
    %31 = arith.mulf %0, %30 : vector<8x8x64xf32>
    %cst_15 = arith.constant dense<0.000000e+00> : vector<8x64xf32>
    %32 = vector.multi_reduction <add>, %31, %cst_15 [1] : vector<8x8x64xf32> to vector<8x64xf32>
    %c0_16 = arith.constant 0 : index
    %c0_17 = arith.constant 0 : index
    %33 = vector.load %arg8[%c0_16, %c0_17] : memref<8x8xf32, #tpu.memory_space<vmem>>, vector<8x8xf32>
    tpu.vector_store %arg8[%c0_16, %c0_17], %28 {strides = array<i32>} : memref<8x8xf32, #tpu.memory_space<vmem>>, vector<8x8xf32>,
    %c0_18 = arith.constant 0 : index
    %c0_19 = arith.constant 0 : index
    %34 = vector.load %arg7[%c0_18, %c0_19] : memref<8x64xf32, #tpu.memory_space<vmem>>, vector<8x64xf32>
    tpu.vector_store %arg7[%c0_18, %c0_19], %32 {strides = array<i32>} : memref<8x64xf32, #tpu.memory_space<vmem>>, vector<8x64xf32>,
    return
  }
  func.func @transform_0(%arg0: i32) -> (i32, i32, i32) {
    %c0_i32 = arith.constant 0 : i32
    %c0_i32_0 = arith.constant 0 : i32
    %c0_i32_1 = arith.constant 0 : i32
    return %arg0, %c0_i32, %c0_i32_0 : i32, i32, i32
  }
  func.func @transform_1(%arg0: i32) -> (i32, i32) {
    %c0_i32 = arith.constant 0 : i32
    %c0_i32_0 = arith.constant 0 : i32
    return %arg0, %c0_i32 : i32, i32
  }
  func.func @transform_2(%arg0: i32) -> (i32, i32) {
    %c0_i32 = arith.constant 0 : i32
    %c0_i32_0 = arith.constant 0 : i32
    %c0_i32_1 = arith.constant 0 : i32
    return %c0_i32, %c0_i32_0 : i32, i32
  }
  func.func @transform_3(%arg0: i32) -> (i32, i32) {
    %c0_i32 = arith.constant 0 : i32
    %c0_i32_0 = arith.constant 0 : i32
    %c0_i32_1 = arith.constant 0 : i32
    return %c0_i32, %c0_i32_0 : i32, i32
  }
  func.func @transform_4(%arg0: i32) -> (i32, i32) {
    %c0_i32 = arith.constant 0 : i32
    %c0_i32_0 = arith.constant 0 : i32
    %c0_i32_1 = arith.constant 0 : i32
    return %c0_i32, %c0_i32_0 : i32, i32
  }
  func.func @transform_5(%arg0: i32) -> (i32, i32) {
    %c0_i32 = arith.constant 0 : i32
    %c0_i32_0 = arith.constant 0 : i32
    %c0_i32_1 = arith.constant 0 : i32
    return %c0_i32, %c0_i32_0 : i32, i32
  }
  func.func @transform_6(%arg0: i32) -> (i32, i32) {
    %c0_i32 = arith.constant 0 : i32
    %c0_i32_0 = arith.constant 0 : i32
    return %arg0, %c0_i32 : i32, i32
  }
  func.func @transform_7(%arg0: i32) -> (i32, i32) {
    %c0_i32 = arith.constant 0 : i32
    %c0_i32_0 = arith.constant 0 : i32
    return %arg0, %c0_i32 : i32, i32
  }
}

</mosaic_0001>

<llo_original>
// kernel: tpu_custom_call.1
$region0: #{tpu_custom_call.1}
  #allocation0 [shape = 'u32[]', space=smem, size = 0x4, offset = 0x4, fixed_abs, tag = 'smem constant byte address 0x4 - core index']
  #allocation1 [shape = 'u32[144,128]{1,0:T(1,128)}', space=vmem, size = 0x12000, scoped, tag = 'internal scratch']
  #allocation2 [shape = 'f32[1,1]{1,0:T(1,128)S(1)}', space=vmem, size = 0x200, scoped, tag = 'scoped memory for tpu_custom_call.1']
  %s0 = inlined_call_operand.vmem [shape: f32[8,8,64], index: 0, kind: input, shape index: {}]
  %s1 = inlined_call_operand.vmem [shape: f32[8,8], index: 1, kind: input, shape index: {}]
  %s2 = inlined_call_operand.vmem [shape: f32[64,32], index: 2, kind: input, shape index: {}]
  %s3 = inlined_call_operand.vmem [shape: f32[1,32], index: 3, kind: input, shape index: {}]
  %s4 = inlined_call_operand.vmem [shape: f32[1,32], index: 4, kind: input, shape index: {}]
  %s5 = inlined_call_operand.<no memory space> [shape: f32[1,1], index: 5, kind: input, shape index: {}]
  %s6 = inlined_call_operand.hbm [shape: f32[8,64], index: 6, kind: output, shape index: {0}]
  %s7 = inlined_call_operand.hbm [shape: f32[8,8], index: 7, kind: output, shape index: {1}]
  %8 = xla_tuple %s6, %s7
  %s9 = sld [smem:[#allocation0]]
  $region42: #{tpu_custom_call.1} parent=0
    _
  %s11 = ssub.s32 1, %s9
  %s12 = scalar_select 0, %s11, %s9
  %v13 = vstv %s5
  %14 = vst [vmem:[#allocation2] sm:$0x1] %v13
  $region1: #{tpu_custom_call.1} parent=0
    #allocation3 [shape = 'u8[4096]{0}', space=vmem, size = 0x1000, scoped, tag = 'output window, operand 0, single buffered']
    #allocation4 [shape = 's32[1]{0}', space=sflag, size = 0x4, scoped, tag = 'scoped memory for tpu_custom_call.1']
    #allocation5 [shape = 'u8[4096]{0}', space=vmem, size = 0x1000, scoped, tag = 'output window, operand 1, single buffered']
    #allocation6 [shape = 's32[1]{0}', space=sflag, size = 0x4, scoped, tag = 'scoped memory for tpu_custom_call.1']
    %15 = vsyncpa [#allocation4], 0
    %16 = vsyncpa [#allocation6], 0
    // Predicated region
    $region2: #{tpu_custom_call.1} parent=1 // pred_check
      _
    $region3: #{tpu_custom_call.1} parent=1 // pred_check_branch
      %18 = sbr.rel (0) target = $region5
    $region4: #{tpu_custom_call.1} parent=1 // pred_region
      _
    $region5: #{tpu_custom_call.1} parent=1 // pred_fallthru
      _
    // Predicated region
    $region6: #{tpu_custom_call.1} parent=1 // pred_check
      _
    $region7: #{tpu_custom_call.1} parent=1 // pred_check_branch
      %20 = sbr.rel (0) target = $region9
    $region8: #{tpu_custom_call.1} parent=1 // pred_region
      _
    $region9: #{tpu_custom_call.1} parent=1 // pred_fallthru
      _
    // Predicated region
    $region10: #{tpu_custom_call.1} parent=1 // pred_check
      _
    $region11: #{tpu_custom_call.1} parent=1 // pred_check_branch
      %22 = sbr.rel (0) target = $region13
    $region12: #{tpu_custom_call.1} parent=1 // pred_region
      _
    $region13: #{tpu_custom_call.1} parent=1 // pred_fallthru
      _
    // Predicated region
    $region14: #{tpu_custom_call.1} parent=1 // pred_check
      _
    $region15: #{tpu_custom_call.1} parent=1 // pred_check_branch
      %24 = sbr.rel (0) target = $region17
    $region16: #{tpu_custom_call.1} parent=1 // pred_region
      _
    $region17: #{tpu_custom_call.1} parent=1 // pred_fallthru
      _
    // Predicated region
    $region18: #{tpu_custom_call.1} parent=1 // pred_check
      _
    $region19: #{tpu_custom_call.1} parent=1 // pred_check_branch
      %26 = sbr.rel (0) target = $region21
    $region20: #{tpu_custom_call.1} parent=1 // pred_region
      _
    $region21: #{tpu_custom_call.1} parent=1 // pred_fallthru
      _
    // Predicated region
    $region22: #{tpu_custom_call.1} parent=1 // pred_check
      _
    $region23: #{tpu_custom_call.1} parent=1 // pred_check_branch
      %28 = sbr.rel (0) target = $region25
    $region24: #{tpu_custom_call.1} parent=1 // pred_region
      _
    $region25: #{tpu_custom_call.1} parent=1 // pred_fallthru
      _
    %v29 = vld [vmem:[%s0] sm:$0xff]
    %v30 = vld [vmem:[%s0 + $0x8] sm:$0xff]
    %v31 = vld [vmem:[%s0 + $0x10] sm:$0xff]
    %v32 = vld [vmem:[%s0 + $0x18] sm:$0xff]
    %v33 = vld [vmem:[%s0 + $0x20] sm:$0xff]
    %v34 = vld [vmem:[%s0 + $0x28] sm:$0xff]
    %v35 = vld [vmem:[%s0 + $0x30] sm:$0xff]
    %v36 = vld [vmem:[%s0 + $0x38] sm:$0xff]
    %v37 = vld [vmem:[%s2] sm:$0xff]
    %v38 = vld [vmem:[%s2 + $0x8] sm:$0xff]
    %v39 = vld [vmem:[%s2 + $0x10] sm:$0xff]
    %v40 = vld [vmem:[%s2 + $0x18] sm:$0xff]
    %v41 = vld [vmem:[%s2 + $0x20] sm:$0xff]
    %v42 = vld [vmem:[%s2 + $0x28] sm:$0xff]
    %v43 = vld [vmem:[%s2 + $0x30] sm:$0xff]
    %v44 = vld [vmem:[%s2 + $0x38] sm:$0xff]
    %v45 = vld [vmem:[%s3] sm:$0x1]
    %v47 = vlaneseq
    %v48 = vshrl.u32 %v47, 7
    %v49 = vsub.s32 0, %v48
    %v50 = vrot.slane %v45, %v49
    %vm52 = vcmask 523264
    %v54 = vsel %vm52, %v29, 0
    %v57 = vsel %vm52, %v30, 0
    %v60 = vsel %vm52, %v31, 0
    %v63 = vsel %vm52, %v32, 0
    %v66 = vsel %vm52, %v33, 0
    %v69 = vsel %vm52, %v34, 0
    %v72 = vsel %vm52, %v35, 0
    %v75 = vsel %vm52, %v36, 0
    %77 = vmatprep.subr.mxu0 0.0
    %78 = vmatpush1.msra.mxu0 0.0
    %79 = vmatprep.subr.mxu0 0.0
    %80 = vmatpush1.msra.mxu0 0.0
    %81 = vmatprep.subr.mxu0 0.0
    %82 = vmatpush1.msra.mxu0 0.0
    %83 = vmatprep.subr.mxu0 0.0
    %84 = vmatpush1.msra.mxu0 0.0
    %85 = vmatprep.subr.mxu0 0.0
    %86 = vmatpush1.msra.mxu0 0.0
    %87 = vmatprep.subr.mxu0 0.0
    %88 = vmatpush1.msra.mxu0 0.0
    %89 = vmatprep.subr.mxu0 0.0
    %90 = vmatpush1.msra.mxu0 0.0
    %91 = vmatprep.subr.mxu0 0.0
    %92 = vmatpush1.msra.mxu0 0.0
    %93 = vmatprep.subr.mxu0 0.0
    %94 = vmatpush1.msra.mxu0 %v44
    %95 = vmatprep.subr.mxu0 0.0
    %96 = vmatpush1.msra.mxu0 %v43
    %97 = vmatprep.subr.mxu0 0.0
    %98 = vmatpush1.msra.mxu0 %v42
    %99 = vmatprep.subr.mxu0 0.0
    %100 = vmatpush1.msra.mxu0 %v41
    %101 = vmatprep.subr.mxu0 0.0
    %102 = vmatpush1.msra.mxu0 %v40
    %103 = vmatprep.subr.mxu0 0.0
    %104 = vmatpush1.msra.mxu0 %v39
    %105 = vmatprep.subr.mxu0 0.0
    %106 = vmatpush1.msra.mxu0 %v38
    %107 = vmatprep.subr.mxu0 0.0
    %108 = vmatpush1.msra.mxu0 %v37
    %109 = vmatprep.subr.mxu0 0.0
    %110 = vmatpush2.msra.mxu0 0.0
    %111 = vmatprep.subr.mxu0 0.0
    %112 = vmatpush2.msra.mxu0 0.0
    %113 = vmatprep.subr.mxu0 0.0
    %114 = vmatpush2.msra.mxu0 0.0
    %115 = vmatprep.subr.mxu0 0.0
    %116 = vmatpush2.msra.mxu0 0.0
    %117 = vmatprep.subr.mxu0 0.0
    %118 = vmatpush2.msra.mxu0 0.0
    %119 = vmatprep.subr.mxu0 0.0
    %120 = vmatpush2.msra.mxu0 0.0
    %121 = vmatprep.subr.mxu0 0.0
    %122 = vmatpush2.msra.mxu0 0.0
    %123 = vmatprep.subr.mxu0 0.0
    %124 = vmatpush2.msra.mxu0 0.0
    %125 = vmatprep.subr.mxu0 0.0
    %126 = vmatpush2.msra.mxu0 0.0
    %127 = vmatprep.subr.mxu0 0.0
    %128 = vmatpush2.msra.mxu0 0.0
    %129 = vmatprep.subr.mxu0 0.0
    %130 = vmatpush2.msra.mxu0 0.0
    %131 = vmatprep.subr.mxu0 0.0
    %132 = vmatpush2.msra.mxu0 0.0
    %133 = vmatprep.subr.mxu0 0.0
    %134 = vmatpush2.msra.mxu0 0.0
    %135 = vmatprep.subr.mxu0 0.0
    %136 = vmatpush2.msra.mxu0 0.0
    %137 = vmatprep.subr.mxu0 0.0
    %138 = vmatpush2.msra.mxu0 0.0
    %139 = vmatprep.subr.mxu0 0.0
    %140 = vmatpush2.msra.mxu0 0.0
    %141 = vmatprep.mubr.f32.mxu0 0.0
    %142 = vmatmul.mubr.f32.gmra.mxu0 %v54
    %v143 = vpop.f32.mrf.mxu0
    %v144 = vadd.f32 %v50, %v143
    %v145 = vpop.f32.mrf.mxu0
    %146 = vmatprep.mubr.f32.mxu0 0.0
    %147 = vmatmul.mubr.f32.gmra.mxu0 %v57
    %v148 = vpop.f32.mrf.mxu0
    %v149 = vadd.f32 %v50, %v148
    %v150 = vpop.f32.mrf.mxu0
    %151 = vmatprep.mubr.f32.mxu0 0.0
    %152 = vmatmul.mubr.f32.gmra.mxu0 %v60
    %v153 = vpop.f32.mrf.mxu0
    %v154 = vadd.f32 %v50, %v153
    %v155 = vpop.f32.mrf.mxu0
    %156 = vmatprep.mubr.f32.mxu0 0.0
    %157 = vmatmul.mubr.f32.gmra.mxu0 %v63
    %v158 = vpop.f32.mrf.mxu0
    %v159 = vadd.f32 %v50, %v158
    %v160 = vpop.f32.mrf.mxu0
    %161 = vmatprep.mubr.f32.mxu0 0.0
    %162 = vmatmul.mubr.f32.gmra.mxu0 %v66
    %v163 = vpop.f32.mrf.mxu0
    %v164 = vadd.f32 %v50, %v163
    %v165 = vpop.f32.mrf.mxu0
    %166 = vmatprep.mubr.f32.mxu0 0.0
    %167 = vmatmul.mubr.f32.gmra.mxu0 %v69
    %v168 = vpop.f32.mrf.mxu0
    %v169 = vadd.f32 %v50, %v168
    %v170 = vpop.f32.mrf.mxu0
    %171 = vmatprep.mubr.f32.mxu0 0.0
    %172 = vmatmul.mubr.f32.gmra.mxu0 %v72
    %v173 = vpop.f32.mrf.mxu0
    %v174 = vadd.f32 %v50, %v173
    %v175 = vpop.f32.mrf.mxu0
    %176 = vmatprep.mubr.f32.mxu0 0.0
    %177 = vmatmul.mubr.f32.gmra.mxu0 %v75
    %v178 = vpop.f32.mrf.mxu0
    %v179 = vadd.f32 %v50, %v178
    %v180 = vpop.f32.mrf.mxu0
    %181 = vdwg.mxu0
    %v182 = vtanh.pop %v144
    %v183 = vtanh.pop %v149
    %v184 = vtanh.pop %v154
    %v185 = vtanh.pop %v159
    %v186 = vtanh.pop %v164
    %v187 = vtanh.pop %v169
    %v188 = vtanh.pop %v174
    %v189 = vtanh.pop %v179
    %v190 = vld [vmem:[%s4] sm:$0x1]
    %v192 = vlaneseq
    %v193 = vshrl.u32 %v192, 7
    %v194 = vsub.s32 0, %v193
    %v195 = vrot.slane %v190, %v194
    %v197 = vmul.f32 %v182, %v195
    %v198 = vmul.f32 %v183, %v195
    %v199 = vmul.f32 %v184, %v195
    %v200 = vmul.f32 %v185, %v195
    %v201 = vmul.f32 %v186, %v195
    %v202 = vmul.f32 %v187, %v195
    %v203 = vmul.f32 %v188, %v195
    %v204 = vmul.f32 %v189, %v195
    %vm205 = vcmask 261120
    %v206 = vsel %vm205, %v197, 0.0
    %207 = vadd.xlane.f32.xlu0 %v206
    %v208 = vpop.xlane.xlu0 %207
    %v209 = vsel %vm205, %v198, 0.0
    %210 = vadd.xlane.f32.xlu0 %v209
    %v211 = vpop.xlane.xlu0 %210
    %v212 = vsel %vm205, %v199, 0.0
    %213 = vadd.xlane.f32.xlu0 %v212
    %v214 = vpop.xlane.xlu0 %213
    %v215 = vsel %vm205, %v200, 0.0
    %216 = vadd.xlane.f32.xlu0 %v215
    %v217 = vpop.xlane.xlu0 %216
    %v218 = vsel %vm205, %v201, 0.0
    %219 = vadd.xlane.f32.xlu0 %v218
    %v220 = vpop.xlane.xlu0 %219
    %v221 = vsel %vm205, %v202, 0.0
    %222 = vadd.xlane.f32.xlu0 %v221
    %v223 = vpop.xlane.xlu0 %222
    %v224 = vsel %vm205, %v203, 0.0
    %225 = vadd.xlane.f32.xlu0 %v224
    %v226 = vpop.xlane.xlu0 %225
    %v227 = vsel %vm205, %v204, 0.0
    %228 = vadd.xlane.f32.xlu0 %v227
    %v229 = vpop.xlane.xlu0 %228
    %v230 = vld [vmem:[#allocation2] sm:$0x1]
    %v232 = vlaneseq
    %v233 = vshrl.u32 %v232, 7
    %v234 = vsub.s32 0, %v233
    %v235 = vrot.slane %v230, %v234
    %236 = vset.pattern.permute.xlu0 0
    %237 = vperm.xlu0 %236, %v235
    %v238 = vpop.permute.xlu0 %237
    %v240 = vadd.f32 %v208, %v238
    %v241 = vadd.f32 %v211, %v238
    %v242 = vadd.f32 %v214, %v238
    %v243 = vadd.f32 %v217, %v238
    %v244 = vadd.f32 %v220, %v238
    %v245 = vadd.f32 %v223, %v238
    %v246 = vadd.f32 %v226, %v238
    %v247 = vadd.f32 %v229, %v238
    %v248 = vld [vmem:[%s1] sm:$0xff]
    %v250 = vlaneseq
    %v251 = vshrl.u32 %v250, 7
    %v252 = vsub.s32 0, %v251
    %v253 = vrot.slane %v248, %v252
    %255 = vbcast.lane.b32.xlu0 %v253, 256
    %v256 = vpop.permute.xlu0 %255
    %v257 = vlaneseq
    %v258 = vshrl.u32 %v257, 7
    %v259 = vsub.s32 1, %v258
    %v260 = vrot.slane %v248, %v259
    %262 = vbcast.lane.b32.xlu0 %v260, 256
    %v263 = vpop.permute.xlu0 %262
    %v264 = vlaneseq
    %v265 = vshrl.u32 %v264, 7
    %v266 = vsub.s32 2, %v265
    %v267 = vrot.slane %v248, %v266
    %269 = vbcast.lane.b32.xlu0 %v267, 256
    %v270 = vpop.permute.xlu0 %269
    %v271 = vlaneseq
    %v272 = vshrl.u32 %v271, 7
    %v273 = vsub.s32 3, %v272
    %v274 = vrot.slane %v248, %v273
    %276 = vbcast.lane.b32.xlu0 %v274, 256
    %v277 = vpop.permute.xlu0 %276
    %v278 = vlaneseq
    %v279 = vshrl.u32 %v278, 7
    %v280 = vsub.s32 4, %v279
    %v281 = vrot.slane %v248, %v280
    %283 = vbcast.lane.b32.xlu0 %v281, 256
    %v284 = vpop.permute.xlu0 %283
    %v285 = vlaneseq
    %v286 = vshrl.u32 %v285, 7
    %v287 = vsub.s32 5, %v286
    %v288 = vrot.slane %v248, %v287
    %290 = vbcast.lane.b32.xlu0 %v288, 256
    %v291 = vpop.permute.xlu0 %290
    %v292 = vlaneseq
    %v293 = vshrl.u32 %v292, 7
    %v294 = vsub.s32 6, %v293
    %v295 = vrot.slane %v248, %v294
    %297 = vbcast.lane.b32.xlu0 %v295, 256
    %v298 = vpop.permute.xlu0 %297
    %v299 = vlaneseq
    %v300 = vshrl.u32 %v299, 7
    %v301 = vsub.s32 7, %v300
    %v302 = vrot.slane %v248, %v301
    %304 = vbcast.lane.b32.xlu0 %v302, 256
    %v305 = vpop.permute.xlu0 %304
    %v314 = vadd.f32 %v240, %v256
    %v315 = vadd.f32 %v241, %v263
    %v316 = vadd.f32 %v242, %v270
    %v317 = vadd.f32 %v243, %v277
    %v318 = vadd.f32 %v244, %v284
    %v319 = vadd.f32 %v245, %v291
    %v320 = vadd.f32 %v246, %v298
    %v321 = vadd.f32 %v247, %v305
    %330 = vset.pattern.permute.xlu0 0
    %331 = vperm.xlu0 %330, %v314
    %v332 = vpop.permute.xlu0 %331
    %333 = vset.pattern.permute.xlu0 0
    %334 = vperm.xlu0 %333, %v315
    %v335 = vpop.permute.xlu0 %334
    %336 = vset.pattern.permute.xlu0 0
    %337 = vperm.xlu0 %336, %v316
    %v338 = vpop.permute.xlu0 %337
    %339 = vset.pattern.permute.xlu0 0
    %340 = vperm.xlu0 %339, %v317
    %v341 = vpop.permute.xlu0 %340
    %342 = vset.pattern.permute.xlu0 0
    %343 = vperm.xlu0 %342, %v318
    %v344 = vpop.permute.xlu0 %343
    %345 = vset.pattern.permute.xlu0 0
    %346 = vperm.xlu0 %345, %v319
    %v347 = vpop.permute.xlu0 %346
    %348 = vset.pattern.permute.xlu0 0
    %349 = vperm.xlu0 %348, %v320
    %v350 = vpop.permute.xlu0 %349
    %351 = vset.pattern.permute.xlu0 0
    %352 = vperm.xlu0 %351, %v321
    %v353 = vpop.permute.xlu0 %352
    %v354 = vlaneseq
    %v355 = vand.u32 %v354, 127
    %v356 = vlaneseq
    %v357 = vshrl.u32 %v356, 7
    %v358 = vsub.s32 %v355, %v357
    %v359 = vrot.slane %v332, %v358
    %v360 = vlaneseq
    %v361 = vshrl.u32 %v360, 7
    %v362 = vsub.s32 %v355, %v361
    %v363 = vrot.slane %v335, %v362
    %v364 = vlaneseq
    %v365 = vshrl.u32 %v364, 7
    %v366 = vsub.s32 %v355, %v365
    %v367 = vrot.slane %v338, %v366
    %v368 = vlaneseq
    %v369 = vshrl.u32 %v368, 7
    %v370 = vsub.s32 %v355, %v369
    %v371 = vrot.slane %v341, %v370
    %v372 = vlaneseq
    %v373 = vshrl.u32 %v372, 7
    %v374 = vsub.s32 %v355, %v373
    %v375 = vrot.slane %v344, %v374
    %v376 = vlaneseq
    %v377 = vshrl.u32 %v376, 7
    %v378 = vsub.s32 %v355, %v377
    %v379 = vrot.slane %v347, %v378
    %v380 = vlaneseq
    %v381 = vshrl.u32 %v380, 7
    %v382 = vsub.s32 %v355, %v381
    %v383 = vrot.slane %v350, %v382
    %v384 = vlaneseq
    %v385 = vshrl.u32 %v384, 7
    %v386 = vsub.s32 %v355, %v385
    %v387 = vrot.slane %v353, %v386
    %vm388 = vcmask 1041409
    %v389 = vsel %vm388, %v363, %v359
    %vm390 = vcmask 1042434
    %v391 = vsel %vm390, %v367, %v389
    %vm392 = vcmask 1043459
    %v393 = vsel %vm392, %v371, %v391
    %vm394 = vcmask 1044484
    %v395 = vsel %vm394, %v375, %v393
    %vm396 = vcmask 1045509
    %v397 = vsel %vm396, %v379, %v395
    %vm398 = vcmask 1046534
    %v399 = vsel %vm398, %v383, %v397
    %vm400 = vcmask 1047559
    %v401 = vsel %vm400, %v387, %v399
    %vm403 = vcmask 64512
    %v404 = vsel %vm403, %v401, -inf
    %405 = vmax.xlane.f32.xlu0 %v404
    %v406 = vpop.xlane.xlu0 %405
    %v408 = vlaneseq
    %v409 = vshrl.u32 %v408, 7
    %v410 = vsub.s32 0, %v409
    %v411 = vrot.slane %v406, %v410
    %v412 = vlaneseq
    %v413 = vshrl.u32 %v412, 7
    %v414 = vsub.s32 1, %v413
    %v415 = vrot.slane %v406, %v414
    %v416 = vlaneseq
    %v417 = vshrl.u32 %v416, 7
    %v418 = vsub.s32 2, %v417
    %v419 = vrot.slane %v406, %v418
    %v420 = vlaneseq
    %v421 = vshrl.u32 %v420, 7
    %v422 = vsub.s32 3, %v421
    %v423 = vrot.slane %v406, %v422
    %v424 = vlaneseq
    %v425 = vshrl.u32 %v424, 7
    %v426 = vsub.s32 4, %v425
    %v427 = vrot.slane %v406, %v426
    %v428 = vlaneseq
    %v429 = vshrl.u32 %v428, 7
    %v430 = vsub.s32 5, %v429
    %v431 = vrot.slane %v406, %v430
    %v432 = vlaneseq
    %v433 = vshrl.u32 %v432, 7
    %v434 = vsub.s32 6, %v433
    %v435 = vrot.slane %v406, %v434
    %v436 = vlaneseq
    %v437 = vshrl.u32 %v436, 7
    %v438 = vsub.s32 7, %v437
    %v439 = vrot.slane %v406, %v438
    %v448 = vsub.f32 %v314, %v411
    %v449 = vsub.f32 %v315, %v415
    %v450 = vsub.f32 %v316, %v419
    %v451 = vsub.f32 %v317, %v423
    %v452 = vsub.f32 %v318, %v427
    %v453 = vsub.f32 %v319, %v431
    %v454 = vsub.f32 %v320, %v435
    %v455 = vsub.f32 %v321, %v439
    %v456 = vmul.f32 %v448, 1.442695
    %v457 = vpow.pop %v456
    %v458 = vmul.f32 %v449, 1.442695
    %v459 = vpow.pop %v458
    %v460 = vmul.f32 %v450, 1.442695
    %v461 = vpow.pop %v460
    %v462 = vmul.f32 %v451, 1.442695
    %v463 = vpow.pop %v462
    %v464 = vmul.f32 %v452, 1.442695
    %v465 = vpow.pop %v464
    %v466 = vmul.f32 %v453, 1.442695
    %v467 = vpow.pop %v466
    %v468 = vmul.f32 %v454, 1.442695
    %v469 = vpow.pop %v468
    %v470 = vmul.f32 %v455, 1.442695
    %v471 = vpow.pop %v470
    %480 = vset.pattern.permute.xlu0 0
    %481 = vperm.xlu0 %480, %v457
    %v482 = vpop.permute.xlu0 %481
    %483 = vset.pattern.permute.xlu0 0
    %484 = vperm.xlu0 %483, %v459
    %v485 = vpop.permute.xlu0 %484
    %486 = vset.pattern.permute.xlu0 0
    %487 = vperm.xlu0 %486, %v461
    %v488 = vpop.permute.xlu0 %487
    %489 = vset.pattern.permute.xlu0 0
    %490 = vperm.xlu0 %489, %v463
    %v491 = vpop.permute.xlu0 %490
    %492 = vset.pattern.permute.xlu0 0
    %493 = vperm.xlu0 %492, %v465
    %v494 = vpop.permute.xlu0 %493
    %495 = vset.pattern.permute.xlu0 0
    %496 = vperm.xlu0 %495, %v467
    %v497 = vpop.permute.xlu0 %496
    %498 = vset.pattern.permute.xlu0 0
    %499 = vperm.xlu0 %498, %v469
    %v500 = vpop.permute.xlu0 %499
    %501 = vset.pattern.permute.xlu0 0
    %502 = vperm.xlu0 %501, %v471
    %v503 = vpop.permute.xlu0 %502
    %v504 = vlaneseq
    %v505 = vshrl.u32 %v504, 7
    %v506 = vsub.s32 %v355, %v505
    %v507 = vrot.slane %v482, %v506
    %v508 = vlaneseq
    %v509 = vshrl.u32 %v508, 7
    %v510 = vsub.s32 %v355, %v509
    %v511 = vrot.slane %v485, %v510
    %v512 = vlaneseq
    %v513 = vshrl.u32 %v512, 7
    %v514 = vsub.s32 %v355, %v513
    %v515 = vrot.slane %v488, %v514
    %v516 = vlaneseq
    %v517 = vshrl.u32 %v516, 7
    %v518 = vsub.s32 %v355, %v517
    %v519 = vrot.slane %v491, %v518
    %v520 = vlaneseq
    %v521 = vshrl.u32 %v520, 7
    %v522 = vsub.s32 %v355, %v521
    %v523 = vrot.slane %v494, %v522
    %v524 = vlaneseq
    %v525 = vshrl.u32 %v524, 7
    %v526 = vsub.s32 %v355, %v525
    %v527 = vrot.slane %v497, %v526
    %v528 = vlaneseq
    %v529 = vshrl.u32 %v528, 7
    %v530 = vsub.s32 %v355, %v529
    %v531 = vrot.slane %v500, %v530
    %v532 = vlaneseq
    %v533 = vshrl.u32 %v532, 7
    %v534 = vsub.s32 %v355, %v533
    %v535 = vrot.slane %v503, %v534
    %v536 = vsel %vm388, %v511, %v507
    %v537 = vsel %vm390, %v515, %v536
    %v538 = vsel %vm392, %v519, %v537
    %v539 = vsel %vm394, %v523, %v538
    %v540 = vsel %vm396, %v527, %v539
    %v541 = vsel %vm398, %v531, %v540
    %v542 = vsel %vm400, %v535, %v541
    %v544 = vsel %vm403, %v542, 0.0
    %545 = vadd.xlane.f32.xlu0 %v544
    %v546 = vpop.xlane.xlu0 %545
    %v547 = vrcp.pop %v546
    %v549 = vlaneseq
    %v550 = vshrl.u32 %v549, 7
    %v551 = vsub.s32 0, %v550
    %v552 = vrot.slane %v547, %v551
    %v553 = vlaneseq
    %v554 = vshrl.u32 %v553, 7
    %v555 = vsub.s32 1, %v554
    %v556 = vrot.slane %v547, %v555
    %v557 = vlaneseq
    %v558 = vshrl.u32 %v557, 7
    %v559 = vsub.s32 2, %v558
    %v560 = vrot.slane %v547, %v559
    %v561 = vlaneseq
    %v562 = vshrl.u32 %v561, 7
    %v563 = vsub.s32 3, %v562
    %v564 = vrot.slane %v547, %v563
    %v565 = vlaneseq
    %v566 = vshrl.u32 %v565, 7
    %v567 = vsub.s32 4, %v566
    %v568 = vrot.slane %v547, %v567
    %v569 = vlaneseq
    %v570 = vshrl.u32 %v569, 7
    %v571 = vsub.s32 5, %v570
    %v572 = vrot.slane %v547, %v571
    %v573 = vlaneseq
    %v574 = vshrl.u32 %v573, 7
    %v575 = vsub.s32 6, %v574
    %v576 = vrot.slane %v547, %v575
    %v577 = vlaneseq
    %v578 = vshrl.u32 %v577, 7
    %v579 = vsub.s32 7, %v578
    %v580 = vrot.slane %v547, %v579
    %v589 = vmul.f32 %v457, %v552
    %v590 = vmul.f32 %v459, %v556
    %v591 = vmul.f32 %v461, %v560
    %v592 = vmul.f32 %v463, %v564
    %v593 = vmul.f32 %v465, %v568
    %v594 = vmul.f32 %v467, %v572
    %v595 = vmul.f32 %v469, %v576
    %v596 = vmul.f32 %v471, %v580
    %598 = vset.pattern.permute.xlu0 0
    %599 = vperm.xlu0 %598, %v589
    %v600 = vpop.permute.xlu0 %599
    %603 = vset.pattern.permute.xlu0 0
    %604 = vperm.xlu0 %603, %v590
    %v605 = vpop.permute.xlu0 %604
    %608 = vset.pattern.permute.xlu0 0
    %609 = vperm.xlu0 %608, %v591
    %v610 = vpop.permute.xlu0 %609
    %613 = vset.pattern.permute.xlu0 0
    %614 = vperm.xlu0 %613, %v592
    %v615 = vpop.permute.xlu0 %614
    %618 = vset.pattern.permute.xlu0 0
    %619 = vperm.xlu0 %618, %v593
    %v620 = vpop.permute.xlu0 %619
    %623 = vset.pattern.permute.xlu0 0
    %624 = vperm.xlu0 %623, %v594
    %v625 = vpop.permute.xlu0 %624
    %628 = vset.pattern.permute.xlu0 0
    %629 = vperm.xlu0 %628, %v595
    %v630 = vpop.permute.xlu0 %629
    %633 = vset.pattern.permute.xlu0 0
    %634 = vperm.xlu0 %633, %v596
    %v635 = vpop.permute.xlu0 %634
    %v637 = vmul.f32 %v29, %v600
    %v638 = vmul.f32 %v30, %v605
    %v639 = vmul.f32 %v31, %v610
    %v640 = vmul.f32 %v32, %v615
    %v641 = vmul.f32 %v33, %v620
    %v642 = vmul.f32 %v34, %v625
    %v643 = vmul.f32 %v35, %v630
    %v644 = vmul.f32 %v36, %v635
    %v645 = vsel %vm52, %v637, 0.0
    %v646 = vrot.slane %v645, 4
    %v647 = vadd.f32 %v645, %v646
    %v648 = vrot.slane %v647, 2
    %v649 = vadd.f32 %v647, %v648
    %v650 = vrot.slane %v649, 1
    %v651 = vadd.f32 %v649, %v650
    %v652 = vsel %vm52, %v638, 0.0
    %v653 = vrot.slane %v652, 4
    %v654 = vadd.f32 %v652, %v653
    %v655 = vrot.slane %v654, 2
    %v656 = vadd.f32 %v654, %v655
    %v657 = vrot.slane %v656, 1
    %v658 = vadd.f32 %v656, %v657
    %v659 = vsel %vm52, %v639, 0.0
    %v660 = vrot.slane %v659, 4
    %v661 = vadd.f32 %v659, %v660
    %v662 = vrot.slane %v661, 2
    %v663 = vadd.f32 %v661, %v662
    %v664 = vrot.slane %v663, 1
    %v665 = vadd.f32 %v663, %v664
    %v666 = vsel %vm52, %v640, 0.0
    %v667 = vrot.slane %v666, 4
    %v668 = vadd.f32 %v666, %v667
    %v669 = vrot.slane %v668, 2
    %v670 = vadd.f32 %v668, %v669
    %v671 = vrot.slane %v670, 1
    %v672 = vadd.f32 %v670, %v671
    %v673 = vsel %vm52, %v641, 0.0
    %v674 = vrot.slane %v673, 4
    %v675 = vadd.f32 %v673, %v674
    %v676 = vrot.slane %v675, 2
    %v677 = vadd.f32 %v675, %v676
    %v678 = vrot.slane %v677, 1
    %v679 = vadd.f32 %v677, %v678
    %v680 = vsel %vm52, %v642, 0.0
    %v681 = vrot.slane %v680, 4
    %v682 = vadd.f32 %v680, %v681
    %v683 = vrot.slane %v682, 2
    %v684 = vadd.f32 %v682, %v683
    %v685 = vrot.slane %v684, 1
    %v686 = vadd.f32 %v684, %v685
    %v687 = vsel %vm52, %v643, 0.0
    %v688 = vrot.slane %v687, 4
    %v689 = vadd.f32 %v687, %v688
    %v690 = vrot.slane %v689, 2
    %v691 = vadd.f32 %v689, %v690
    %v692 = vrot.slane %v691, 1
    %v693 = vadd.f32 %v691, %v692
    %v694 = vsel %vm52, %v644, 0.0
    %v695 = vrot.slane %v694, 4
    %v696 = vadd.f32 %v694, %v695
    %v697 = vrot.slane %v696, 2
    %v698 = vadd.f32 %v696, %v697
    %v699 = vrot.slane %v698, 1
    %v700 = vadd.f32 %v698, %v699
    %v701 = vlaneseq
    %v702 = vshrl.u32 %v701, 7
    %v703 = vsub.s32 %v355, %v702
    %v704 = vrot.slane %v600, %v703
    %v705 = vlaneseq
    %v706 = vshrl.u32 %v705, 7
    %v707 = vsub.s32 %v355, %v706
    %v708 = vrot.slane %v605, %v707
    %v709 = vlaneseq
    %v710 = vshrl.u32 %v709, 7
    %v711 = vsub.s32 %v355, %v710
    %v712 = vrot.slane %v610, %v711
    %v713 = vlaneseq
    %v714 = vshrl.u32 %v713, 7
    %v715 = vsub.s32 %v355, %v714
    %v716 = vrot.slane %v615, %v715
    %v717 = vlaneseq
    %v718 = vshrl.u32 %v717, 7
    %v719 = vsub.s32 %v355, %v718
    %v720 = vrot.slane %v620, %v719
    %v721 = vlaneseq
    %v722 = vshrl.u32 %v721, 7
    %v723 = vsub.s32 %v355, %v722
    %v724 = vrot.slane %v625, %v723
    %v725 = vlaneseq
    %v726 = vshrl.u32 %v725, 7
    %v727 = vsub.s32 %v355, %v726
    %v728 = vrot.slane %v630, %v727
    %v729 = vlaneseq
    %v730 = vshrl.u32 %v729, 7
    %v731 = vsub.s32 %v355, %v730
    %v732 = vrot.slane %v635, %v731
    %v733 = vsel %vm388, %v708, %v704
    %v734 = vsel %vm390, %v712, %v733
    %v735 = vsel %vm392, %v716, %v734
    %v736 = vsel %vm394, %v720, %v735
    %v737 = vsel %vm396, %v724, %v736
    %v738 = vsel %vm398, %v728, %v737
    %v739 = vsel %vm400, %v732, %v738
    %741 = vst.msk [vmem:[#allocation5] sm:$0xff] %vm403, %v739
    %v750 = vsel %vm388, %v658, %v651
    %v751 = vsel %vm390, %v665, %v750
    %v752 = vsel %vm392, %v672, %v751
    %v753 = vsel %vm394, %v679, %v752
    %v754 = vsel %vm396, %v686, %v753
    %v755 = vsel %vm398, %v693, %v754
    %v756 = vsel %vm400, %v700, %v755
    %758 = vst.msk [vmem:[#allocation3] sm:$0xff] %vm52, %v756
    // Predicated region
    $region26: #{tpu_custom_call.1} parent=1 // pred_check
      _
    $region27: #{tpu_custom_call.1} parent=1 // pred_check_branch
      %760 = sbr.rel (0) target = $region29
    $region28: #{tpu_custom_call.1} parent=1 // pred_region
      %s762 = ssub.s32 128, 128
      %763 = vsyncadd [#allocation4], %s762
      %s765 = sshll.u32 [#allocation3], 4
      %s766 = int_to_ptr.vmem [resolvable:$true] %s765
      %768 = dma.vmem_to_hbm [thread:$0]  %s766, 128, %s6, [#allocation4]
    $region29: #{tpu_custom_call.1} parent=1 // pred_fallthru
      _
    // Predicated region
    $region30: #{tpu_custom_call.1} parent=1 // pred_check
      _
    $region31: #{tpu_custom_call.1} parent=1 // pred_check_branch
      %770 = sbr.rel (0) target = $region33
    $region32: #{tpu_custom_call.1} parent=1 // pred_region
      %s772 = ssub.s32 128, 128
      %773 = vsyncadd [#allocation6], %s772
      %s775 = sshll.u32 [#allocation5], 4
      %s776 = int_to_ptr.vmem [resolvable:$true] %s775
      %778 = dma.vmem_to_hbm [thread:$0]  %s776, 128, %s7, [#allocation6]
    $region33: #{tpu_custom_call.1} parent=1 // pred_fallthru
      _
    // Predicated region
    $region34: #{tpu_custom_call.1} parent=1 // pred_check
      _
    $region35: #{tpu_custom_call.1} parent=1 // pred_check_branch
      %780 = sbr.rel (0) target = $region37
    $region36: #{tpu_custom_call.1} parent=1 // pred_region
      %781 = dma.done [#allocation4], 128
    $region37: #{tpu_custom_call.1} parent=1 // pred_fallthru
      _
    // Predicated region
    $region38: #{tpu_custom_call.1} parent=1 // pred_check
      _
    $region39: #{tpu_custom_call.1} parent=1 // pred_check_branch
      %783 = sbr.rel (0) target = $region41
    $region40: #{tpu_custom_call.1} parent=1 // pred_region
      %784 = dma.done [#allocation6], 128
    $region41: #{tpu_custom_call.1} parent=1 // pred_fallthru
      _
    %785 = vsyncpa [#allocation4], 1
    %786 = vsyncpa [#allocation6], 1

</llo_original>
